<compile_context>
chip_gen: v6e
topology: v6e:2x2x1
jax: 0.10.0
libtpu: 0.0.40
codegen_flags: <defaults>
</compile_context>

<pallas_src>
import functools
import numpy as np

import jax
import jax.numpy as jnp
from jax import lax
from jax.experimental import pallas as pl
from jax.experimental.pallas import tpu as pltpu

_VMEM_LIMIT = 32 * 1024 * 1024  # safe on v5e/v6e/v7x; tiles below are far smaller

# dot_general dimension numbers
_DN_NT = (((1,), (1,)), ((), ()))  # contract last dim of LHS with last dim of RHS (x @ w.T)
_DN_NN = (((1,), (0,)), ((), ()))  # ordinary matmul


# ---------------------------------------------------------------------------
# Fused Q/K/V projection with head split folded into the out_specs
# ---------------------------------------------------------------------------
def _qkv_proj_kernel(xq_ref, xk_ref, xv_ref,
                     wq_ref, wk_ref, wv_ref,
                     bq_ref, bk_ref, bv_ref,
                     qo_ref, ko_ref, vo_ref, *, compute_dtype):
    def proj(x_ref, w_ref, b_ref, o_ref):
        x = x_ref[...].astype(compute_dtype)           # (ts, d)
        w = w_ref[...].astype(compute_dtype)           # (d_k, d)  PyTorch (out, in) layout
        y = lax.dot_general(x, w, _DN_NT, preferred_element_type=jnp.float32)
        o_ref[...] = (y + b_ref[...]).astype(o_ref.dtype)

    proj(xq_ref, wq_ref, bq_ref, qo_ref)
    proj(xk_ref, wk_ref, bk_ref, ko_ref)
    proj(xv_ref, wv_ref, bv_ref, vo_ref)


def qkv_projection(xq, xk, xv, wq, wk, wv, bq, bk, bv, n_heads,
                   *, compute_dtype=jnp.float32):
    """x*: (B, S, d); w*: (d, d); b*: (n, 1, d_k) -> three (B, n, S, d_k)."""
    B, S, d = xq.shape
    d_k = d // n_heads
    ts = S if S <= 256 else 256                        # row tile (256-multiples for v6e/v7x MXU)
    grid = (B, pl.cdiv(S, ts), n_heads)

    x_spec = pl.BlockSpec((None, ts, d), lambda b, si, h: (b, si, 0))
    w_spec = pl.BlockSpec((d_k, d), lambda b, si, h: (h, 0))
    b_spec = pl.BlockSpec((None, 1, d_k), lambda b, si, h: (h, 0, 0))
    o_spec = pl.BlockSpec((None, None, ts, d_k), lambda b, si, h: (b, h, si, 0))
    out_sd = jax.ShapeDtypeStruct((B, n_heads, S, d_k), jnp.float32)

    return pl.pallas_call(
        functools.partial(_qkv_proj_kernel, compute_dtype=compute_dtype),
        out_shape=(out_sd, out_sd, out_sd),
        grid=grid,
        in_specs=[x_spec, x_spec, x_spec,
                  w_spec, w_spec, w_spec,
                  b_spec, b_spec, b_spec],
        out_specs=(o_spec, o_spec, o_spec),
        compiler_params=pltpu.CompilerParams(
            # head axis innermost + "arbitrary" so the x tile DMA is reused across heads
            dimension_semantics=("parallel", "parallel", "arbitrary"),
            vmem_limit_bytes=_VMEM_LIMIT,
        ),
    )(xq, xk, xv, wq, wk, wv, bq, bk, bv)


# ---------------------------------------------------------------------------
# Scaled dot-product attention, query-tiled
# ---------------------------------------------------------------------------
def _attn_kernel(q_ref, k_ref, v_ref, o_ref, a_ref, *, scale, compute_dtype):
    # fold 1/sqrt(d_k) into Q (S*d_k muls, not S*S)
    q = (q_ref[...] * scale).astype(compute_dtype)     # (tq, d_k)
    k = k_ref[...].astype(compute_dtype)               # (S, d_k)
    scores = lax.dot_general(q, k, _DN_NT, preferred_element_type=jnp.float32)  # (tq, S)
    # numerically-stable softmax in f32 (matches torch.softmax); EUP reciprocal
    m = jnp.max(scores, axis=-1, keepdims=True)
    p = jnp.exp(scores - m)
    inv = pl.reciprocal(jnp.sum(p, axis=-1, keepdims=True), approx=True)
    attn = p * inv
    o_ref[...] = lax.dot_general(
        attn.astype(compute_dtype), v_ref[...].astype(compute_dtype),
        _DN_NN, preferred_element_type=jnp.float32).astype(o_ref.dtype)
    a_ref[...] = attn.astype(a_ref.dtype)


def scaled_dot_product(q, k, v, *, compute_dtype=jnp.float32):
    """q, k, v: (B, n, S, d_k) -> (out (B,n,S,d_k), attn (B,n,S,S))."""
    # TODO(synk): a flash-style path (no attn-weights output, K/V streamed) would be
    # the bigger bandwidth win, but the module's forward returns the full attn tensor.
    B, n, S, d_k = q.shape
    scale = 1.0 / np.sqrt(d_k)
    tq = S if S <= 128 else 128                        # bounds VMEM: live tile is (tq, S)
    grid = (B, n, pl.cdiv(S, tq))

    q_spec = pl.BlockSpec((None, None, tq, d_k), lambda b, h, qi: (b, h, qi, 0))
    kv_spec = pl.BlockSpec((None, None, S, d_k), lambda b, h, qi: (b, h, 0, 0))
    o_spec = pl.BlockSpec((None, None, tq, d_k), lambda b, h, qi: (b, h, qi, 0))
    a_spec = pl.BlockSpec((None, None, tq, S), lambda b, h, qi: (b, h, qi, 0))

    out, attn = pl.pallas_call(
        functools.partial(_attn_kernel, scale=scale, compute_dtype=compute_dtype),
        out_shape=(jax.ShapeDtypeStruct((B, n, S, d_k), jnp.float32),
                   jax.ShapeDtypeStruct((B, n, S, S), jnp.float32)),
        grid=grid,
        in_specs=[q_spec, kv_spec, kv_spec],
        out_specs=(o_spec, a_spec),
        compiler_params=pltpu.CompilerParams(
            # B, n parallel (>=2 units for v7x dual-TC); q axis sequential so K/V DMA is reused
            dimension_semantics=("parallel", "parallel", "arbitrary"),
            vmem_limit_bytes=_VMEM_LIMIT,
        ),
    )(q, k, v)
    return out, attn


# ---------------------------------------------------------------------------
# Row-tiled linear: y = x @ W^T + b   (PyTorch nn.Linear semantics)
# ---------------------------------------------------------------------------
def _linear_kernel(x_ref, w_ref, b_ref, o_ref, *, compute_dtype):
    x = x_ref[...].astype(compute_dtype)
    w = w_ref[...].astype(compute_dtype)
    y = lax.dot_general(x, w, _DN_NT, preferred_element_type=jnp.float32)
    o_ref[...] = (y + b_ref[...]).astype(o_ref.dtype)


def linear(x2d, w, b2d, *, compute_dtype=jnp.float32):
    """x2d: (M, d_in); w: (d_out, d_in); b2d: (1, d_out) -> (M, d_out)."""
    M, d_in = x2d.shape
    d_out = w.shape[0]
    tm = M if M <= 256 else 256                        # pipelined row tiles
    grid = (pl.cdiv(M, tm),)
    return pl.pallas_call(
        functools.partial(_linear_kernel, compute_dtype=compute_dtype),
        out_shape=jax.ShapeDtypeStruct((M, d_out), jnp.float32),
        grid=grid,
        in_specs=[pl.BlockSpec((tm, d_in), lambda i: (i, 0)),
                  pl.BlockSpec((d_out, d_in), lambda i: (0, 0)),
                  pl.BlockSpec((1, d_out), lambda i: (0, 0))],
        out_specs=pl.BlockSpec((tm, d_out), lambda i: (i, 0)),
        compiler_params=pltpu.CompilerParams(
            dimension_semantics=("parallel",),
            vmem_limit_bytes=_VMEM_LIMIT,
        ),
    )(x2d, w, b2d)


# ---------------------------------------------------------------------------
# Parameter packing (done ONCE, not per forward call)
# ---------------------------------------------------------------------------
def pack_params(params, n_heads):
    d = params["wq"].shape[0]
    d_k = d // n_heads
    packed = dict(params)
    for nm in ("q", "k", "v"):
        packed["b" + nm] = params["b" + nm].reshape(n_heads, 1, d_k)
    packed["bo"] = params["bo"].reshape(1, d)
    return packed


# ---------------------------------------------------------------------------
# Full MultiHeadAttention forward
# ---------------------------------------------------------------------------
def multi_head_attention(Q, K, V, packed_params, n_heads, *, compute_dtype=jnp.float32):
    """Q, K, V: (B, S, d) float32. Returns (out (B,S,d), attn (B,n,S,S))."""
    # TODO(synk): optional `mask` path (masked_fill before softmax) not wired up;
    # this matches the reference default mask=None.
    B, S, d = Q.shape
    p = packed_params

    q, k, v = qkv_projection(Q, K, V,
                             p["wq"], p["wk"], p["wv"],
                             p["bq"], p["bk"], p["bv"],
                             n_heads, compute_dtype=compute_dtype)

    out_h, attn = scaled_dot_product(q, k, v, compute_dtype=compute_dtype)

    ctx = out_h.transpose(0, 2, 1, 3).reshape(B * S, d)   # combine heads (plain-JAX glue)
    out = linear(ctx, p["wo"], p["bo"], compute_dtype=compute_dtype).reshape(B, S, d)
    return out, attn


# ---------------------------------------------------------------------------
# Pure-JAX reference for correctness checking
# ---------------------------------------------------------------------------
def _reference(Q, K, V, params, n_heads):
    B, S, d = Q.shape
    d_k = d // n_heads

    def lin(x, w, b):
        return x @ w.T + b

    def split(x):
        return x.reshape(B, S, n_heads, d_k).transpose(0, 2, 1, 3)

    q = split(lin(Q, params["wq"], params["bq"]))
    k = split(lin(K, params["wk"], params["bk"]))
    v = split(lin(V, params["wv"], params["bv"]))
    scores = jnp.einsum("bhqd,bhkd->bhqk", q, k) / np.sqrt(d_k)
    attn = jax.nn.softmax(scores, axis=-1)
    out_h = jnp.einsum("bhqk,bhkd->bhqd", attn, v)
    out = out_h.transpose(0, 2, 1, 3).reshape(B, S, d)
    out = lin(out, params["wo"], params["bo"])
    return out, attn


if __name__ == "__main__":
    B, S, d, n_heads = 2, 8, 32, 4

    key = jax.random.PRNGKey(0)
    keys = jax.random.split(key, 11)
    bound = 1.0 / np.sqrt(d)  # PyTorch nn.Linear default init scale

    params = {
        "wq": jax.random.uniform(keys[0], (d, d), jnp.float32, -bound, bound),
        "bq": jax.random.uniform(keys[1], (d,), jnp.float32, -bound, bound),
        "wk": jax.random.uniform(keys[2], (d, d), jnp.float32, -bound, bound),
        "bk": jax.random.uniform(keys[3], (d,), jnp.float32, -bound, bound),
        "wv": jax.random.uniform(keys[4], (d, d), jnp.float32, -bound, bound),
        "bv": jax.random.uniform(keys[5], (d,), jnp.float32, -bound, bound),
        "wo": jax.random.uniform(keys[6], (d, d), jnp.float32, -bound, bound),
        "bo": jax.random.uniform(keys[7], (d,), jnp.float32, -bound, bound),
    }

    Q = jax.random.normal(keys[8], (B, S, d), jnp.float32)
    K = jax.random.normal(keys[9], (B, S, d), jnp.float32)
    V = jax.random.normal(keys[10], (B, S, d), jnp.float32)

    packed = pack_params(params, n_heads)

    out, attn = multi_head_attention(Q, K, V, packed, n_heads,
                                     compute_dtype=jnp.float32)
    out, attn = jax.block_until_ready((out, attn))

    out_ref, attn_ref = _reference(Q, K, V, params, n_heads)
    # tolerances account for the EUP approximate-reciprocal softmax normalization
    np.testing.assert_allclose(np.asarray(attn), np.asarray(attn_ref),
                               atol=2e-3, rtol=2e-3)
    np.testing.assert_allclose(np.asarray(out), np.asarray(out_ref),
                               atol=3e-3, rtol=3e-3)

    print("KERNEL_OK")
</pallas_src>

<mosaic_0001>
module attributes {stable_mosaic.version = 11 : i64} {
  func.func @_qkv_proj_kernel(%arg0: i32, %arg1: i32, %arg2: i32, %arg3: memref<1x8x32xf32, #tpu.memory_space<vmem>>, %arg4: memref<1x8x32xf32, #tpu.memory_space<vmem>>, %arg5: memref<1x8x32xf32, #tpu.memory_space<vmem>>, %arg6: memref<8x32xf32, #tpu.memory_space<vmem>>, %arg7: memref<8x32xf32, #tpu.memory_space<vmem>>, %arg8: memref<8x32xf32, #tpu.memory_space<vmem>>, %arg9: memref<1x1x8xf32, #tpu.memory_space<vmem>>, %arg10: memref<1x1x8xf32, #tpu.memory_space<vmem>>, %arg11: memref<1x1x8xf32, #tpu.memory_space<vmem>>, %arg12: memref<1x1x8x8xf32, #tpu.memory_space<vmem>>, %arg13: memref<1x1x8x8xf32, #tpu.memory_space<vmem>>, %arg14: memref<1x1x8x8xf32, #tpu.memory_space<vmem>>) attributes {dimension_semantics = [#tpu.dimension_semantics<parallel>, #tpu.dimension_semantics<parallel>, #tpu.dimension_semantics<arbitrary>], iteration_bounds = array<i64: 2, 1, 4>, scalar_prefetch = 0 : i64, scratch_operands = 0 : i64, tpu.core_type = #tpu.core_type<tc>, window_params = [{transform_indices = @transform_0, window_bounds = array<i64: 1, 8, 32>}, {transform_indices = @transform_1, window_bounds = array<i64: 1, 8, 32>}, {transform_indices = @transform_2, window_bounds = array<i64: 1, 8, 32>}, {transform_indices = @transform_3, window_bounds = array<i64: 8, 32>}, {transform_indices = @transform_4, window_bounds = array<i64: 8, 32>}, {transform_indices = @transform_5, window_bounds = array<i64: 8, 32>}, {transform_indices = @transform_6, window_bounds = array<i64: 1, 1, 8>}, {transform_indices = @transform_7, window_bounds = array<i64: 1, 1, 8>}, {transform_indices = @transform_8, window_bounds = array<i64: 1, 1, 8>}, {transform_indices = @transform_9, window_bounds = array<i64: 1, 1, 8, 8>}, {transform_indices = @transform_10, window_bounds = array<i64: 1, 1, 8, 8>}, {transform_indices = @transform_11, window_bounds = array<i64: 1, 1, 8, 8>}]} {
    %c0 = arith.constant 0 : index
    %c0_0 = arith.constant 0 : index
    %c0_1 = arith.constant 0 : index
    %0 = vector.load %arg3[%c0, %c0_0, %c0_1] : memref<1x8x32xf32, #tpu.memory_space<vmem>>, vector<1x8x32xf32>
    %1 = vector.shape_cast %0 : vector<1x8x32xf32> to vector<8x32xf32>
    %c0_2 = arith.constant 0 : index
    %c0_3 = arith.constant 0 : index
    %2 = vector.load %arg6[%c0_2, %c0_3] : memref<8x32xf32, #tpu.memory_space<vmem>>, vector<8x32xf32>
    %cst = arith.constant dense<0.000000e+00> : vector<8x8xf32>
    %3 = tpu.matmul %1, %2, %cst {dimension_numbers = #tpu.dot_dimension_numbers<[1], [1], [0], [0], [0, 0, 1, 0], [], []>} : vector<8x32xf32>, vector<8x32xf32>, vector<8x8xf32> -> vector<8x8xf32>
    %c0_4 = arith.constant 0 : index
    %c0_5 = arith.constant 0 : index
    %c0_6 = arith.constant 0 : index
    %4 = vector.load %arg9[%c0_4, %c0_5, %c0_6] : memref<1x1x8xf32, #tpu.memory_space<vmem>>, vector<1x1x8xf32>
    %5 = vector.shape_cast %4 : vector<1x1x8xf32> to vector<1x8xf32>
    %6 = vector.broadcast %5 : vector<1x8xf32> to vector<8x8xf32>
    %7 = arith.addf %3, %6 : vector<8x8xf32>
    %c0_7 = arith.constant 0 : index
    %c0_8 = arith.constant 0 : index
    %c0_9 = arith.constant 0 : index
    %c0_10 = arith.constant 0 : index
    %8 = vector.load %arg12[%c0_7, %c0_8, %c0_9, %c0_10] : memref<1x1x8x8xf32, #tpu.memory_space<vmem>>, vector<1x1x8x8xf32>
    %9 = vector.shape_cast %8 : vector<1x1x8x8xf32> to vector<8x8xf32>
    %10 = vector.shape_cast %7 : vector<8x8xf32> to vector<1x1x8x8xf32>
    tpu.vector_store %arg12[%c0_7, %c0_8, %c0_9, %c0_10], %10 {strides = array<i32>} : memref<1x1x8x8xf32, #tpu.memory_space<vmem>>, vector<1x1x8x8xf32>,
    %c0_11 = arith.constant 0 : index
    %c0_12 = arith.constant 0 : index
    %c0_13 = arith.constant 0 : index
    %11 = vector.load %arg4[%c0_11, %c0_12, %c0_13] : memref<1x8x32xf32, #tpu.memory_space<vmem>>, vector<1x8x32xf32>
    %12 = vector.shape_cast %11 : vector<1x8x32xf32> to vector<8x32xf32>
    %c0_14 = arith.constant 0 : index
    %c0_15 = arith.constant 0 : index
    %13 = vector.load %arg7[%c0_14, %c0_15] : memref<8x32xf32, #tpu.memory_space<vmem>>, vector<8x32xf32>
    %cst_16 = arith.constant dense<0.000000e+00> : vector<8x8xf32>
    %14 = tpu.matmul %12, %13, %cst_16 {dimension_numbers = #tpu.dot_dimension_numbers<[1], [1], [0], [0], [0, 0, 1, 0], [], []>} : vector<8x32xf32>, vector<8x32xf32>, vector<8x8xf32> -> vector<8x8xf32>
    %c0_17 = arith.constant 0 : index
    %c0_18 = arith.constant 0 : index
    %c0_19 = arith.constant 0 : index
    %15 = vector.load %arg10[%c0_17, %c0_18, %c0_19] : memref<1x1x8xf32, #tpu.memory_space<vmem>>, vector<1x1x8xf32>
    %16 = vector.shape_cast %15 : vector<1x1x8xf32> to vector<1x8xf32>
    %17 = vector.broadcast %16 : vector<1x8xf32> to vector<8x8xf32>
    %18 = arith.addf %14, %17 : vector<8x8xf32>
    %c0_20 = arith.constant 0 : index
    %c0_21 = arith.constant 0 : index
    %c0_22 = arith.constant 0 : index
    %c0_23 = arith.constant 0 : index
    %19 = vector.load %arg13[%c0_20, %c0_21, %c0_22, %c0_23] : memref<1x1x8x8xf32, #tpu.memory_space<vmem>>, vector<1x1x8x8xf32>
    %20 = vector.shape_cast %19 : vector<1x1x8x8xf32> to vector<8x8xf32>
    %21 = vector.shape_cast %18 : vector<8x8xf32> to vector<1x1x8x8xf32>
    tpu.vector_store %arg13[%c0_20, %c0_21, %c0_22, %c0_23], %21 {strides = array<i32>} : memref<1x1x8x8xf32, #tpu.memory_space<vmem>>, vector<1x1x8x8xf32>,
    %c0_24 = arith.constant 0 : index
    %c0_25 = arith.constant 0 : index
    %c0_26 = arith.constant 0 : index
    %22 = vector.load %arg5[%c0_24, %c0_25, %c0_26] : memref<1x8x32xf32, #tpu.memory_space<vmem>>, vector<1x8x32xf32>
    %23 = vector.shape_cast %22 : vector<1x8x32xf32> to vector<8x32xf32>
    %c0_27 = arith.constant 0 : index
    %c0_28 = arith.constant 0 : index
    %24 = vector.load %arg8[%c0_27, %c0_28] : memref<8x32xf32, #tpu.memory_space<vmem>>, vector<8x32xf32>
    %cst_29 = arith.constant dense<0.000000e+00> : vector<8x8xf32>
    %25 = tpu.matmul %23, %24, %cst_29 {dimension_numbers = #tpu.dot_dimension_numbers<[1], [1], [0], [0], [0, 0, 1, 0], [], []>} : vector<8x32xf32>, vector<8x32xf32>, vector<8x8xf32> -> vector<8x8xf32>
    %c0_30 = arith.constant 0 : index
    %c0_31 = arith.constant 0 : index
    %c0_32 = arith.constant 0 : index
    %26 = vector.load %arg11[%c0_30, %c0_31, %c0_32] : memref<1x1x8xf32, #tpu.memory_space<vmem>>, vector<1x1x8xf32>
    %27 = vector.shape_cast %26 : vector<1x1x8xf32> to vector<1x8xf32>
    %28 = vector.broadcast %27 : vector<1x8xf32> to vector<8x8xf32>
    %29 = arith.addf %25, %28 : vector<8x8xf32>
    %c0_33 = arith.constant 0 : index
    %c0_34 = arith.constant 0 : index
    %c0_35 = arith.constant 0 : index
    %c0_36 = arith.constant 0 : index
    %30 = vector.load %arg14[%c0_33, %c0_34, %c0_35, %c0_36] : memref<1x1x8x8xf32, #tpu.memory_space<vmem>>, vector<1x1x8x8xf32>
    %31 = vector.shape_cast %30 : vector<1x1x8x8xf32> to vector<8x8xf32>
    %32 = vector.shape_cast %29 : vector<8x8xf32> to vector<1x1x8x8xf32>
    tpu.vector_store %arg14[%c0_33, %c0_34, %c0_35, %c0_36], %32 {strides = array<i32>} : memref<1x1x8x8xf32, #tpu.memory_space<vmem>>, vector<1x1x8x8xf32>,
    return
  }
  func.func @transform_0(%arg0: i32, %arg1: i32, %arg2: i32) -> (i32, i32, i32) {
    %c0_i32 = arith.constant 0 : i32
    %c0_i32_0 = arith.constant 0 : i32
    return %arg0, %arg1, %c0_i32 : i32, i32, i32
  }
  func.func @transform_1(%arg0: i32, %arg1: i32, %arg2: i32) -> (i32, i32, i32) {
    %c0_i32 = arith.constant 0 : i32
    %c0_i32_0 = arith.constant 0 : i32
    return %arg0, %arg1, %c0_i32 : i32, i32, i32
  }
  func.func @transform_2(%arg0: i32, %arg1: i32, %arg2: i32) -> (i32, i32, i32) {
    %c0_i32 = arith.constant 0 : i32
    %c0_i32_0 = arith.constant 0 : i32
    return %arg0, %arg1, %c0_i32 : i32, i32, i32
  }
  func.func @transform_3(%arg0: i32, %arg1: i32, %arg2: i32) -> (i32, i32) {
    %c0_i32 = arith.constant 0 : i32
    %c0_i32_0 = arith.constant 0 : i32
    return %arg2, %c0_i32 : i32, i32
  }
  func.func @transform_4(%arg0: i32, %arg1: i32, %arg2: i32) -> (i32, i32) {
    %c0_i32 = arith.constant 0 : i32
    %c0_i32_0 = arith.constant 0 : i32
    return %arg2, %c0_i32 : i32, i32
  }
  func.func @transform_5(%arg0: i32, %arg1: i32, %arg2: i32) -> (i32, i32) {
    %c0_i32 = arith.constant 0 : i32
    %c0_i32_0 = arith.constant 0 : i32
    return %arg2, %c0_i32 : i32, i32
  }
  func.func @transform_6(%arg0: i32, %arg1: i32, %arg2: i32) -> (i32, i32, i32) {
    %c0_i32 = arith.constant 0 : i32
    %c0_i32_0 = arith.constant 0 : i32
    %c0_i32_1 = arith.constant 0 : i32
    return %arg2, %c0_i32, %c0_i32_0 : i32, i32, i32
  }
  func.func @transform_7(%arg0: i32, %arg1: i32, %arg2: i32) -> (i32, i32, i32) {
    %c0_i32 = arith.constant 0 : i32
    %c0_i32_0 = arith.constant 0 : i32
    %c0_i32_1 = arith.constant 0 : i32
    return %arg2, %c0_i32, %c0_i32_0 : i32, i32, i32
  }
  func.func @transform_8(%arg0: i32, %arg1: i32, %arg2: i32) -> (i32, i32, i32) {
    %c0_i32 = arith.constant 0 : i32
    %c0_i32_0 = arith.constant 0 : i32
    %c0_i32_1 = arith.constant 0 : i32
    return %arg2, %c0_i32, %c0_i32_0 : i32, i32, i32
  }
  func.func @transform_9(%arg0: i32, %arg1: i32, %arg2: i32) -> (i32, i32, i32, i32) {
    %c0_i32 = arith.constant 0 : i32
    %c0_i32_0 = arith.constant 0 : i32
    return %arg0, %arg2, %arg1, %c0_i32 : i32, i32, i32, i32
  }
  func.func @transform_10(%arg0: i32, %arg1: i32, %arg2: i32) -> (i32, i32, i32, i32) {
    %c0_i32 = arith.constant 0 : i32
    %c0_i32_0 = arith.constant 0 : i32
    return %arg0, %arg2, %arg1, %c0_i32 : i32, i32, i32, i32
  }
  func.func @transform_11(%arg0: i32, %arg1: i32, %arg2: i32) -> (i32, i32, i32, i32) {
    %c0_i32 = arith.constant 0 : i32
    %c0_i32_0 = arith.constant 0 : i32
    return %arg0, %arg2, %arg1, %c0_i32 : i32, i32, i32, i32
  }
}

</mosaic_0001>

<llo_original>
// kernel: tpu_custom_call.1
$region0: #{tpu_custom_call.1}
  #allocation0 [shape = 'u32[]', space=smem, size = 0x4, offset = 0x4, fixed_abs, tag = 'smem constant byte address 0x4 - core index']
  #allocation1 [shape = 'u32[144,128]{1,0:T(1,128)}', space=vmem, size = 0x12000, scoped, tag = 'internal scratch']
  %s0 = inlined_call_operand.hbm [shape: f32[2,8,32], index: 0, kind: input, shape index: {}]
  %s1 = inlined_call_operand.hbm [shape: f32[2,8,32], index: 1, kind: input, shape index: {}]
  %s2 = inlined_call_operand.hbm [shape: f32[2,8,32], index: 2, kind: input, shape index: {}]
  %s3 = inlined_call_operand.hbm [shape: f32[32,32], index: 3, kind: input, shape index: {}]
  %s4 = inlined_call_operand.hbm [shape: f32[32,32], index: 4, kind: input, shape index: {}]
  %s5 = inlined_call_operand.hbm [shape: f32[32,32], index: 5, kind: input, shape index: {}]
  %s6 = inlined_call_operand.vmem [shape: f32[4,1,8], index: 6, kind: input, shape index: {}]
  %s7 = inlined_call_operand.vmem [shape: f32[4,1,8], index: 7, kind: input, shape index: {}]
  %s8 = inlined_call_operand.vmem [shape: f32[4,1,8], index: 8, kind: input, shape index: {}]
  %s9 = inlined_call_operand.hbm [shape: f32[2,4,8,8], index: 9, kind: output, shape index: {0}]
  %s10 = inlined_call_operand.hbm [shape: f32[2,4,8,8], index: 10, kind: output, shape index: {1}]
  %s11 = inlined_call_operand.hbm [shape: f32[2,4,8,8], index: 11, kind: output, shape index: {2}]
  %12 = xla_tuple %s9, %s10, %s11
  %s13 = sld [smem:[#allocation0]]
  $region109: #{tpu_custom_call.1} parent=0
    _
  %s15 = ssub.s32 1, %s13
  %s16 = scalar_select 0, %s15, %s13
  $region1: #{tpu_custom_call.1} parent=0
    #allocation2 [shape = 'u8[8192]{0}', space=vmem, size = 0x2000, scoped, tag = 'input window, operand 0']
    #allocation3 [shape = 's32[2]{0}', space=sflag, size = 0x8, scoped, tag = 'scoped memory for tpu_custom_call.1']
    #allocation4 [shape = 's32[2]{0}', space=sflag, size = 0x8, scoped, tag = 'scoped memory for tpu_custom_call.1']
    #allocation5 [shape = 'u8[8192]{0}', space=vmem, size = 0x2000, scoped, tag = 'input window, operand 1']
    #allocation6 [shape = 's32[2]{0}', space=sflag, size = 0x8, scoped, tag = 'scoped memory for tpu_custom_call.1']
    #allocation7 [shape = 'u8[8192]{0}', space=vmem, size = 0x2000, scoped, tag = 'input window, operand 2']
    #allocation8 [shape = 'u8[8192]{0}', space=vmem, size = 0x2000, scoped, tag = 'input window, operand 3']
    #allocation9 [shape = 's32[2]{0}', space=sflag, size = 0x8, scoped, tag = 'scoped memory for tpu_custom_call.1']
    #allocation10 [shape = 'u8[8192]{0}', space=vmem, size = 0x2000, scoped, tag = 'input window, operand 4']
    #allocation11 [shape = 'u8[8192]{0}', space=vmem, size = 0x2000, scoped, tag = 'input window, operand 5']
    #allocation12 [shape = 's32[2]{0}', space=sflag, size = 0x8, scoped, tag = 'scoped memory for tpu_custom_call.1']
    #allocation13 [shape = 'u8[8192]{0}', space=vmem, size = 0x2000, scoped, tag = 'output window, operand 0']
    #allocation14 [shape = 'u8[8192]{0}', space=vmem, size = 0x2000, scoped, tag = 'output window, operand 1']
    #allocation15 [shape = 's32[2]{0}', space=sflag, size = 0x8, scoped, tag = 'scoped memory for tpu_custom_call.1']
    #allocation16 [shape = 'u8[8192]{0}', space=vmem, size = 0x2000, scoped, tag = 'output window, operand 2']
    %17 = vsyncpa [#allocation3], 0
    %s18 = scalar_lea.sflag [#allocation3], 1
    %19 = vsyncpa %s18, 0
    %20 = vsyncpa [#allocation6], 0
    %s21 = scalar_lea.sflag [#allocation6], 1
    %22 = vsyncpa %s21, 0
    %23 = vsyncpa [#allocation9], 0
    %s24 = scalar_lea.sflag [#allocation9], 1
    %25 = vsyncpa %s24, 0
    %26 = vsyncpa [#allocation12], 0
    %s27 = scalar_lea.sflag [#allocation12], 1
    %28 = vsyncpa %s27, 0
    %29 = vsyncpa [#allocation4], 0
    %s30 = scalar_lea.sflag [#allocation4], 1
    %31 = vsyncpa %s30, 0
    %32 = vsyncpa [#allocation15], 0
    %s33 = scalar_lea.sflag [#allocation15], 1
    %34 = vsyncpa %s33, 0
    loop: start=0, step=1, limit=10
    $region2: #{tpu_custom_call.1} parent=1 // loop_pre_header
      _
    $region3: #{tpu_custom_call.1} parent=1 // loop_header
      %s36 = sphi 0, %s40
      %p37 = scmp.ge.s32.totalorder %s36, 10
      %s43 = sphi 0, %s62
      %s44 = sphi 0, %s58
      %s45 = sphi 0, %s54
      %s46 = sphi 0, %s43
      %s47 = sphi 0, %s44
      %s48 = sphi 0, %s45
      %s49 = sphi 0, %s46
      %s50 = sphi 0, %s47
      %s51 = sphi 0, %s48
      %s67 = sphi 0, %s69
      %s70 = sphi 0, %s67
      %s71 = sphi 0, %s70
      %s87 = sphi 0, %s71
      %s95 = sphi 0, %s97
      %s98 = sphi 0, %s95
      %s99 = sphi 0, %s98
      %s115 = sphi 0, %s99
      %s123 = sphi 0, %s125
      %s126 = sphi 0, %s123
      %s127 = sphi 0, %s126
      %s143 = sphi 0, %s127
      %s149 = sphi 0, %s151
      %s152 = sphi 0, %s149
      %s153 = sphi 0, %s152
      %s169 = sphi 0, %s153
      %s175 = sphi 0, %s177
      %s178 = sphi 0, %s175
      %s179 = sphi 0, %s178
      %s195 = sphi 0, %s179
      %s201 = sphi 0, %s203
      %s204 = sphi 0, %s201
      %s205 = sphi 0, %s204
      %s221 = sphi 0, %s205
      %s227 = sphi 0, %s229
      %s230 = sphi 0, %s227
      %s231 = sphi 0, %s230
      %s247 = sphi 0, %s231
      %s253 = sphi 0, %s255
      %s256 = sphi 0, %s253
      %s257 = sphi 0, %s256
      %s273 = sphi 0, %s257
      %s279 = sphi 0, %s281
      %s282 = sphi 0, %s279
      %s283 = sphi 0, %s282
      %s299 = sphi 0, %s283
      %s309 = sphi 0, %s311
      %s312 = sphi 0, %s309
      %s313 = sphi 0, %s312
      %s329 = sphi 0, %s313
      %s339 = sphi 0, %s341
      %s342 = sphi 0, %s339
      %s343 = sphi 0, %s342
      %s359 = sphi 0, %s343
      %s369 = sphi 0, %s371
      %s372 = sphi 0, %s369
      %s373 = sphi 0, %s372
      %s389 = sphi 0, %s373
    $region4: #{tpu_custom_call.1} parent=1 // loop_header_branch
      %39 = sbr.rel (%p37) target = $region8
    $region5: #{tpu_custom_call.1} parent=1 // loop_body
      %s41 = ssub.s32 %s36, 1
      %s42 = ssub.s32 %s36, 2
      %s52 = sadd.s32 1, %s45
      %p53 = scmp.ge.s32.totalorder %s52, 4
      %s54 = scalar_select %p53, 0, %s52
      %s55 = sadd.s32 1, %s44
      %s56 = scalar_select %p53, %s55, %s44
      %p57 = scmp.ge.s32.totalorder %s56, 1
      %s58 = scalar_select %p57, 0, %s56
      %s59 = sadd.s32 1, %s43
      %s60 = scalar_select %p57, %s59, %s43
      %p61 = scmp.ge.s32.totalorder %s60, 2
      %s62 = scalar_select %p61, 0, %s60
      %s63 = ssub.s32 %s43, %s62
      %s64 = ssub.s32 %s44, %s58
      %s65 = sor.u32 %s63, %s64
      %p66 = scmp.eq.s32.totalorder %s65, 0
      %s68 = sadd.s32 %s67, 1
      %s69 = scalar_select %p66, %s67, %s68
      %p72 = pneg %p66
      %p73 = scmp.eq.s32.totalorder %s36, 7
      %p74 = por %p72, %p73
      %p75 = scmp.ne.s32.totalorder %s67, %s70
      %p76 = scmp.eq.s32.totalorder %s36, 0
      %p77 = por %p75, %p76
      %p78 = scmp.ne.s32.totalorder %s67, %s70
      %p79 = scmp.eq.s32.totalorder %s41, 7
      %p80 = por %p78, %p79
      %p81 = scmp.ne.s32.totalorder %s70, %s71
      %p82 = scmp.eq.s32.totalorder %s41, 0
      %p83 = por %p81, %p82
      %p84 = scmp.ne.s32.totalorder %s70, %s71
      %p85 = scmp.eq.s32.totalorder %s42, 7
      %p86 = por %p84, %p85
      %p88 = scmp.ne.s32.totalorder %s71, %s87
      %p89 = scmp.eq.s32.totalorder %s42, 0
      %p90 = por %p88, %p89
      %s91 = ssub.s32 %s43, %s62
      %s92 = ssub.s32 %s44, %s58
      %s93 = sor.u32 %s91, %s92
      %p94 = scmp.eq.s32.totalorder %s93, 0
      %s96 = sadd.s32 %s95, 1
      %s97 = scalar_select %p94, %s95, %s96
      %p100 = pneg %p94
      %p101 = scmp.eq.s32.totalorder %s36, 7
      %p102 = por %p100, %p101
      %p103 = scmp.ne.s32.totalorder %s95, %s98
      %p104 = scmp.eq.s32.totalorder %s36, 0
      %p105 = por %p103, %p104
      %p106 = scmp.ne.s32.totalorder %s95, %s98
      %p107 = scmp.eq.s32.totalorder %s41, 7
      %p108 = por %p106, %p107
      %p109 = scmp.ne.s32.totalorder %s98, %s99
      %p110 = scmp.eq.s32.totalorder %s41, 0
      %p111 = por %p109, %p110
      %p112 = scmp.ne.s32.totalorder %s98, %s99
      %p113 = scmp.eq.s32.totalorder %s42, 7
      %p114 = por %p112, %p113
      %p116 = scmp.ne.s32.totalorder %s99, %s115
      %p117 = scmp.eq.s32.totalorder %s42, 0
      %p118 = por %p116, %p117
      %s119 = ssub.s32 %s43, %s62
      %s120 = ssub.s32 %s44, %s58
      %s121 = sor.u32 %s119, %s120
      %p122 = scmp.eq.s32.totalorder %s121, 0
      %s124 = sadd.s32 %s123, 1
      %s125 = scalar_select %p122, %s123, %s124
      %p128 = pneg %p122
      %p129 = scmp.eq.s32.totalorder %s36, 7
      %p130 = por %p128, %p129
      %p131 = scmp.ne.s32.totalorder %s123, %s126
      %p132 = scmp.eq.s32.totalorder %s36, 0
      %p133 = por %p131, %p132
      %p134 = scmp.ne.s32.totalorder %s123, %s126
      %p135 = scmp.eq.s32.totalorder %s41, 7
      %p136 = por %p134, %p135
      %p137 = scmp.ne.s32.totalorder %s126, %s127
      %p138 = scmp.eq.s32.totalorder %s41, 0
      %p139 = por %p137, %p138
      %p140 = scmp.ne.s32.totalorder %s126, %s127
      %p141 = scmp.eq.s32.totalorder %s42, 7
      %p142 = por %p140, %p141
      %p144 = scmp.ne.s32.totalorder %s127, %s143
      %p145 = scmp.eq.s32.totalorder %s42, 0
      %p146 = por %p144, %p145
      %s147 = ssub.s32 %s45, %s54
      %p148 = scmp.eq.s32.totalorder %s147, 0
      %s150 = sadd.s32 %s149, 1
      %s151 = scalar_select %p148, %s149, %s150
      %p154 = pneg %p148
      %p155 = scmp.eq.s32.totalorder %s36, 7
      %p156 = por %p154, %p155
      %p157 = scmp.ne.s32.totalorder %s149, %s152
      %p158 = scmp.eq.s32.totalorder %s36, 0
      %p159 = por %p157, %p158
      %p160 = scmp.ne.s32.totalorder %s149, %s152
      %p161 = scmp.eq.s32.totalorder %s41, 7
      %p162 = por %p160, %p161
      %p163 = scmp.ne.s32.totalorder %s152, %s153
      %p164 = scmp.eq.s32.totalorder %s41, 0
      %p165 = por %p163, %p164
      %p166 = scmp.ne.s32.totalorder %s152, %s153
      %p167 = scmp.eq.s32.totalorder %s42, 7
      %p168 = por %p166, %p167
      %p170 = scmp.ne.s32.totalorder %s153, %s169
      %p171 = scmp.eq.s32.totalorder %s42, 0
      %p172 = por %p170, %p171
      %s173 = ssub.s32 %s45, %s54
      %p174 = scmp.eq.s32.totalorder %s173, 0
      %s176 = sadd.s32 %s175, 1
      %s177 = scalar_select %p174, %s175, %s176
      %p180 = pneg %p174
      %p181 = scmp.eq.s32.totalorder %s36, 7
      %p182 = por %p180, %p181
      %p183 = scmp.ne.s32.totalorder %s175, %s178
      %p184 = scmp.eq.s32.totalorder %s36, 0
      %p185 = por %p183, %p184
      %p186 = scmp.ne.s32.totalorder %s175, %s178
      %p187 = scmp.eq.s32.totalorder %s41, 7
      %p188 = por %p186, %p187
      %p189 = scmp.ne.s32.totalorder %s178, %s179
      %p190 = scmp.eq.s32.totalorder %s41, 0
      %p191 = por %p189, %p190
      %p192 = scmp.ne.s32.totalorder %s178, %s179
      %p193 = scmp.eq.s32.totalorder %s42, 7
      %p194 = por %p192, %p193
      %p196 = scmp.ne.s32.totalorder %s179, %s195
      %p197 = scmp.eq.s32.totalorder %s42, 0
      %p198 = por %p196, %p197
      %s199 = ssub.s32 %s45, %s54
      %p200 = scmp.eq.s32.totalorder %s199, 0
      %s202 = sadd.s32 %s201, 1
      %s203 = scalar_select %p200, %s201, %s202
      %p206 = pneg %p200
      %p207 = scmp.eq.s32.totalorder %s36, 7
      %p208 = por %p206, %p207
      %p209 = scmp.ne.s32.totalorder %s201, %s204
      %p210 = scmp.eq.s32.totalorder %s36, 0
      %p211 = por %p209, %p210
      %p212 = scmp.ne.s32.totalorder %s201, %s204
      %p213 = scmp.eq.s32.totalorder %s41, 7
      %p214 = por %p212, %p213
      %p215 = scmp.ne.s32.totalorder %s204, %s205
      %p216 = scmp.eq.s32.totalorder %s41, 0
      %p217 = por %p215, %p216
      %p218 = scmp.ne.s32.totalorder %s204, %s205
      %p219 = scmp.eq.s32.totalorder %s42, 7
      %p220 = por %p218, %p219
      %p222 = scmp.ne.s32.totalorder %s205, %s221
      %p223 = scmp.eq.s32.totalorder %s42, 0
      %p224 = por %p222, %p223
      %s225 = ssub.s32 %s45, %s54
      %p226 = scmp.eq.s32.totalorder %s225, 0
      %s228 = sadd.s32 %s227, 1
      %s229 = scalar_select %p226, %s227, %s228
      %p232 = pneg %p226
      %p233 = scmp.eq.s32.totalorder %s36, 7
      %p234 = por %p232, %p233
      %p235 = scmp.ne.s32.totalorder %s227, %s230
      %p236 = scmp.eq.s32.totalorder %s36, 0
      %p237 = por %p235, %p236
      %p238 = scmp.ne.s32.totalorder %s227, %s230
      %p239 = scmp.eq.s32.totalorder %s41, 7
      %p240 = por %p238, %p239
      %p241 = scmp.ne.s32.totalorder %s230, %s231
      %p242 = scmp.eq.s32.totalorder %s41, 0
      %p243 = por %p241, %p242
      %p244 = scmp.ne.s32.totalorder %s230, %s231
      %p245 = scmp.eq.s32.totalorder %s42, 7
      %p246 = por %p244, %p245
      %p248 = scmp.ne.s32.totalorder %s231, %s247
      %p249 = scmp.eq.s32.totalorder %s42, 0
      %p250 = por %p248, %p249
      %s251 = ssub.s32 %s45, %s54
      %p252 = scmp.eq.s32.totalorder %s251, 0
      %s254 = sadd.s32 %s253, 1
      %s255 = scalar_select %p252, %s253, %s254
      %p258 = pneg %p252
      %p259 = scmp.eq.s32.totalorder %s36, 7
      %p260 = por %p258, %p259
      %p261 = scmp.ne.s32.totalorder %s253, %s256
      %p262 = scmp.eq.s32.totalorder %s36, 0
      %p263 = por %p261, %p262
      %p264 = scmp.ne.s32.totalorder %s253, %s256
      %p265 = scmp.eq.s32.totalorder %s41, 7
      %p266 = por %p264, %p265
      %p267 = scmp.ne.s32.totalorder %s256, %s257
      %p268 = scmp.eq.s32.totalorder %s41, 0
      %p269 = por %p267, %p268
      %p270 = scmp.ne.s32.totalorder %s256, %s257
      %p271 = scmp.eq.s32.totalorder %s42, 7
      %p272 = por %p270, %p271
      %p274 = scmp.ne.s32.totalorder %s257, %s273
      %p275 = scmp.eq.s32.totalorder %s42, 0
      %p276 = por %p274, %p275
      %s277 = ssub.s32 %s45, %s54
      %p278 = scmp.eq.s32.totalorder %s277, 0
      %s280 = sadd.s32 %s279, 1
      %s281 = scalar_select %p278, %s279, %s280
      %p284 = pneg %p278
      %p285 = scmp.eq.s32.totalorder %s36, 7
      %p286 = por %p284, %p285
      %p287 = scmp.ne.s32.totalorder %s279, %s282
      %p288 = scmp.eq.s32.totalorder %s36, 0
      %p289 = por %p287, %p288
      %p290 = scmp.ne.s32.totalorder %s279, %s282
      %p291 = scmp.eq.s32.totalorder %s41, 7
      %p292 = por %p290, %p291
      %p293 = scmp.ne.s32.totalorder %s282, %s283
      %p294 = scmp.eq.s32.totalorder %s41, 0
      %p295 = por %p293, %p294
      %p296 = scmp.ne.s32.totalorder %s282, %s283
      %p297 = scmp.eq.s32.totalorder %s42, 7
      %p298 = por %p296, %p297
      %p300 = scmp.ne.s32.totalorder %s283, %s299
      %p301 = scmp.eq.s32.totalorder %s42, 0
      %p302 = por %p300, %p301
      %s303 = ssub.s32 %s43, %s62
      %s304 = ssub.s32 %s45, %s54
      %s305 = sor.u32 %s303, %s304
      %s306 = ssub.s32 %s44, %s58
      %s307 = sor.u32 %s305, %s306
      %p308 = scmp.eq.s32.totalorder %s307, 0
      %s310 = sadd.s32 %s309, 1
      %s311 = scalar_select %p308, %s309, %s310
      %p314 = pneg %p308
      %p315 = scmp.eq.s32.totalorder %s36, 7
      %p316 = por %p314, %p315
      %p317 = scmp.ne.s32.totalorder %s309, %s312
      %p318 = scmp.eq.s32.totalorder %s36, 0
      %p319 = por %p317, %p318
      %p320 = scmp.ne.s32.totalorder %s309, %s312
      %p321 = scmp.eq.s32.totalorder %s41, 7
      %p322 = por %p320, %p321
      %p323 = scmp.ne.s32.totalorder %s312, %s313
      %p324 = scmp.eq.s32.totalorder %s41, 0
      %p325 = por %p323, %p324
      %p326 = scmp.ne.s32.totalorder %s312, %s313
      %p327 = scmp.eq.s32.totalorder %s42, 7
      %p328 = por %p326, %p327
      %p330 = scmp.ne.s32.totalorder %s313, %s329
      %p331 = scmp.eq.s32.totalorder %s42, 0
      %p332 = por %p330, %p331
      %s333 = ssub.s32 %s43, %s62
      %s334 = ssub.s32 %s45, %s54
      %s335 = sor.u32 %s333, %s334
      %s336 = ssub.s32 %s44, %s58
      %s337 = sor.u32 %s335, %s336
      %p338 = scmp.eq.s32.totalorder %s337, 0
      %s340 = sadd.s32 %s339, 1
      %s341 = scalar_select %p338, %s339, %s340
      %p344 = pneg %p338
      %p345 = scmp.eq.s32.totalorder %s36, 7
      %p346 = por %p344, %p345
      %p347 = scmp.ne.s32.totalorder %s339, %s342
      %p348 = scmp.eq.s32.totalorder %s36, 0
      %p349 = por %p347, %p348
      %p350 = scmp.ne.s32.totalorder %s339, %s342
      %p351 = scmp.eq.s32.totalorder %s41, 7
      %p352 = por %p350, %p351
      %p353 = scmp.ne.s32.totalorder %s342, %s343
      %p354 = scmp.eq.s32.totalorder %s41, 0
      %p355 = por %p353, %p354
      %p356 = scmp.ne.s32.totalorder %s342, %s343
      %p357 = scmp.eq.s32.totalorder %s42, 7
      %p358 = por %p356, %p357
      %p360 = scmp.ne.s32.totalorder %s343, %s359
      %p361 = scmp.eq.s32.totalorder %s42, 0
      %p362 = por %p360, %p361
      %s363 = ssub.s32 %s43, %s62
      %s364 = ssub.s32 %s45, %s54
      %s365 = sor.u32 %s363, %s364
      %s366 = ssub.s32 %s44, %s58
      %s367 = sor.u32 %s365, %s366
      %p368 = scmp.eq.s32.totalorder %s367, 0
      %s370 = sadd.s32 %s369, 1
      %s371 = scalar_select %p368, %s369, %s370
      %p374 = pneg %p368
      %p375 = scmp.eq.s32.totalorder %s36, 7
      %p376 = por %p374, %p375
      %p377 = scmp.ne.s32.totalorder %s369, %s372
      %p378 = scmp.eq.s32.totalorder %s36, 0
      %p379 = por %p377, %p378
      %p380 = scmp.ne.s32.totalorder %s369, %s372
      %p381 = scmp.eq.s32.totalorder %s41, 7
      %p382 = por %p380, %p381
      %p383 = scmp.ne.s32.totalorder %s372, %s373
      %p384 = scmp.eq.s32.totalorder %s41, 0
      %p385 = por %p383, %p384
      %p386 = scmp.ne.s32.totalorder %s372, %s373
      %p387 = scmp.eq.s32.totalorder %s42, 7
      %p388 = por %p386, %p387
      %p390 = scmp.ne.s32.totalorder %s373, %s389
      %p391 = scmp.eq.s32.totalorder %s42, 0
      %p392 = por %p390, %p391
      %p393 = scmp.le.s32.totalorder 1, %s36
      %p394 = scmp.lt.s32.totalorder %s36, 9
      %p395 = pnand %p393, %p394
      %p396 = pneg %p395
      // Predicated region
      $region9: #{tpu_custom_call.1} parent=5 // pred_check
        _
      $region10: #{tpu_custom_call.1} parent=5 // pred_check_branch
        %398 = sbr.rel (%p395) target = $region12
      $region11: #{tpu_custom_call.1} parent=5 // pred_region
        %s399 = ssub.s32 %s36, 1
      $region12: #{tpu_custom_call.1} parent=5 // pred_fallthru
        _
      %p400 = scmp.lt.s32.totalorder %s36, 8
      // Predicated region
      $region13: #{tpu_custom_call.1} parent=5 // pred_check
        %p401 = pneg %p400
      $region14: #{tpu_custom_call.1} parent=5 // pred_check_branch
        %403 = sbr.rel (%p401) target = $region16
      $region15: #{tpu_custom_call.1} parent=5 // pred_region
        // Predicated region
        $region17: #{tpu_custom_call.1} parent=15 // pred_check
          %p404 = pneg %p77
        $region18: #{tpu_custom_call.1} parent=15 // pred_check_branch
          %406 = sbr.rel (%p404) target = $region20
        $region19: #{tpu_custom_call.1} parent=15 // pred_region
          %s407 = sand.u32 %s67, 1
          %s408 = scalar_lea.sflag [#allocation3], %s407
          %s409 = sand.u32 %s67, 1
          %s410 = smul.addr %s409, 8
          %s411 = scalar_lea.vmem [#allocation2], %s410
          %s413 = ssub.s32 128, 128
          %414 = vsyncadd %s408, %s413
          %s415 = sadd.s32 %s44, %s43
          %s416 = smul.addr %s415, 128
          %s417 = scalar_lea.hbm %s0, %s416
          %s419 = sshll.u32 %s411, 4
          %s420 = int_to_ptr.vmem [resolvable:$true] %s419
          %422 = dma.hbm_to_vmem [thread:$0]  %s417, 128, %s420, %s408
        $region20: #{tpu_custom_call.1} parent=15 // pred_fallthru
          _
        // Predicated region
        $region21: #{tpu_custom_call.1} parent=15 // pred_check
          %p423 = pneg %p105
        $region22: #{tpu_custom_call.1} parent=15 // pred_check_branch
          %425 = sbr.rel (%p423) target = $region24
        $region23: #{tpu_custom_call.1} parent=15 // pred_region
          %s426 = sand.u32 %s36, 1
          %s427 = scalar_lea.sflag [#allocation6], %s426
          %s428 = sand.u32 %s95, 1
          %s429 = smul.addr %s428, 8
          %s430 = scalar_lea.vmem [#allocation5], %s429
          %s432 = ssub.s32 128, 128
          %433 = vsyncadd %s427, %s432
          %s434 = sadd.s32 %s44, %s43
          %s435 = smul.addr %s434, 128
          %s436 = scalar_lea.hbm %s1, %s435
          %s438 = sshll.u32 %s430, 4
          %s439 = int_to_ptr.vmem [resolvable:$true] %s438
          %441 = dma.hbm_to_vmem [thread:$0]  %s436, 128, %s439, %s427
        $region24: #{tpu_custom_call.1} parent=15 // pred_fallthru
          _
        // Predicated region
        $region25: #{tpu_custom_call.1} parent=15 // pred_check
          %p442 = pneg %p133
        $region26: #{tpu_custom_call.1} parent=15 // pred_check_branch
          %444 = sbr.rel (%p442) target = $region28
        $region27: #{tpu_custom_call.1} parent=15 // pred_region
          %s445 = sand.u32 %s36, 1
          %s446 = scalar_lea.sflag [#allocation6], %s445
          %s447 = sand.u32 %s123, 1
          %s448 = smul.addr %s447, 8
          %s449 = scalar_lea.vmem [#allocation7], %s448
          %s451 = ssub.s32 128, 128
          %452 = vsyncadd %s446, %s451
          %s453 = sadd.s32 %s44, %s43
          %s454 = smul.addr %s453, 128
          %s455 = scalar_lea.hbm %s2, %s454
          %s457 = sshll.u32 %s449, 4
          %s458 = int_to_ptr.vmem [resolvable:$true] %s457
          %460 = dma.hbm_to_vmem [thread:$0]  %s455, 128, %s458, %s446
        $region28: #{tpu_custom_call.1} parent=15 // pred_fallthru
          _
        // Predicated region
        $region29: #{tpu_custom_call.1} parent=15 // pred_check
          %p461 = pneg %p159
        $region30: #{tpu_custom_call.1} parent=15 // pred_check_branch
          %463 = sbr.rel (%p461) target = $region32
        $region31: #{tpu_custom_call.1} parent=15 // pred_region
          %s464 = sand.u32 %s36, 1
          %s465 = scalar_lea.sflag [#allocation9], %s464
          %s466 = sand.u32 %s149, 1
          %s467 = smul.addr %s466, 8
          %s468 = scalar_lea.vmem [#allocation8], %s467
          %s470 = ssub.s32 128, 128
          %471 = vsyncadd %s465, %s470
          %s472 = smul.addr %s45, 128
          %s473 = scalar_lea.hbm %s3, %s472
          %s475 = sshll.u32 %s468, 4
          %s476 = int_to_ptr.vmem [resolvable:$true] %s475
          %478 = dma.hbm_to_vmem [thread:$0]  %s473, 128, %s476, %s465
        $region32: #{tpu_custom_call.1} parent=15 // pred_fallthru
          _
        // Predicated region
        $region33: #{tpu_custom_call.1} parent=15 // pred_check
          %p479 = pneg %p185
        $region34: #{tpu_custom_call.1} parent=15 // pred_check_branch
          %481 = sbr.rel (%p479) target = $region36
        $region35: #{tpu_custom_call.1} parent=15 // pred_region
          %s482 = sand.u32 %s36, 1
          %s483 = scalar_lea.sflag [#allocation9], %s482
          %s484 = sand.u32 %s175, 1
          %s485 = smul.addr %s484, 8
          %s486 = scalar_lea.vmem [#allocation10], %s485
          %s488 = ssub.s32 128, 128
          %489 = vsyncadd %s483, %s488
          %s490 = smul.addr %s45, 128
          %s491 = scalar_lea.hbm %s4, %s490
          %s493 = sshll.u32 %s486, 4
          %s494 = int_to_ptr.vmem [resolvable:$true] %s493
          %496 = dma.hbm_to_vmem [thread:$0]  %s491, 128, %s494, %s483
        $region36: #{tpu_custom_call.1} parent=15 // pred_fallthru
          _
        // Predicated region
        $region37: #{tpu_custom_call.1} parent=15 // pred_check
          %p497 = pneg %p211
        $region38: #{tpu_custom_call.1} parent=15 // pred_check_branch
          %499 = sbr.rel (%p497) target = $region40
        $region39: #{tpu_custom_call.1} parent=15 // pred_region
          %s500 = sand.u32 %s201, 1
          %s501 = scalar_lea.sflag [#allocation12], %s500
          %s502 = sand.u32 %s201, 1
          %s503 = smul.addr %s502, 8
          %s504 = scalar_lea.vmem [#allocation11], %s503
          %s506 = ssub.s32 128, 128
          %507 = vsyncadd %s501, %s506
          %s508 = smul.addr %s45, 128
          %s509 = scalar_lea.hbm %s5, %s508
          %s511 = sshll.u32 %s504, 4
          %s512 = int_to_ptr.vmem [resolvable:$true] %s511
          %514 = dma.hbm_to_vmem [thread:$0]  %s509, 128, %s512, %s501
        $region40: #{tpu_custom_call.1} parent=15 // pred_fallthru
          _
        // Predicated region
        $region41: #{tpu_custom_call.1} parent=15 // pred_check
          %p515 = pneg %p237
        $region42: #{tpu_custom_call.1} parent=15 // pred_check_branch
          %517 = sbr.rel (%p515) target = $region44
        $region43: #{tpu_custom_call.1} parent=15 // pred_region
          %p518 = scmp.lt.s32.totalorder %s45, 3
          %s519 = scalar_select %p518, %s45, 3
          %s520 = scalar_lea.vmem %s6, %s519
        $region44: #{tpu_custom_call.1} parent=15 // pred_fallthru
          _
        // Predicated region
        $region45: #{tpu_custom_call.1} parent=15 // pred_check
          %p521 = pneg %p263
        $region46: #{tpu_custom_call.1} parent=15 // pred_check_branch
          %523 = sbr.rel (%p521) target = $region48
        $region47: #{tpu_custom_call.1} parent=15 // pred_region
          %p524 = scmp.lt.s32.totalorder %s45, 3
          %s525 = scalar_select %p524, %s45, 3
          %s526 = scalar_lea.vmem %s7, %s525
        $region48: #{tpu_custom_call.1} parent=15 // pred_fallthru
          _
        // Predicated region
        $region49: #{tpu_custom_call.1} parent=15 // pred_check
          %p527 = pneg %p289
        $region50: #{tpu_custom_call.1} parent=15 // pred_check_branch
          %529 = sbr.rel (%p527) target = $region52
        $region51: #{tpu_custom_call.1} parent=15 // pred_region
          %p530 = scmp.lt.s32.totalorder %s45, 3
          %s531 = scalar_select %p530, %s45, 3
          %s532 = scalar_lea.vmem %s8, %s531
        $region52: #{tpu_custom_call.1} parent=15 // pred_fallthru
          _
      $region16: #{tpu_custom_call.1} parent=5 // pred_fallthru
        _
      %p533 = scmp.le.s32.totalorder 1, %s36
      %p534 = scmp.lt.s32.totalorder %s36, 9
      %p535 = pnand %p533, %p534
      %p536 = pneg %p535
      // Predicated region
      $region53: #{tpu_custom_call.1} parent=5 // pred_check
        _
      $region54: #{tpu_custom_call.1} parent=5 // pred_check_branch
        %538 = sbr.rel (%p535) target = $region56
      $region55: #{tpu_custom_call.1} parent=5 // pred_region
        %s539 = ssub.s32 %s36, 1
        %s540 = sand.u32 %s70, 1
        %s541 = scalar_lea.sflag [#allocation3], %s540
        %s542 = sand.u32 %s70, 1
        %s543 = smul.addr %s542, 8
        %s544 = scalar_lea.vmem [#allocation2], %s543
        // Predicated region
        $region57: #{tpu_custom_call.1} parent=55 // pred_check
          %p545 = pneg %p83
        $region58: #{tpu_custom_call.1} parent=55 // pred_check_branch
          %547 = sbr.rel (%p545) target = $region60
        $region59: #{tpu_custom_call.1} parent=55 // pred_region
          %548 = dma.done %s541, 128
        $region60: #{tpu_custom_call.1} parent=55 // pred_fallthru
          _
        %s549 = sand.u32 %s41, 1
        %s550 = scalar_lea.sflag [#allocation6], %s549
        %s551 = sand.u32 %s98, 1
        %s552 = smul.addr %s551, 8
        %s553 = scalar_lea.vmem [#allocation5], %s552
        // Predicated region
        $region61: #{tpu_custom_call.1} parent=55 // pred_check
          %p554 = pneg %p111
        $region62: #{tpu_custom_call.1} parent=55 // pred_check_branch
          %556 = sbr.rel (%p554) target = $region64
        $region63: #{tpu_custom_call.1} parent=55 // pred_region
          %557 = dma.done %s550, 128
        $region64: #{tpu_custom_call.1} parent=55 // pred_fallthru
          _
        %s558 = sand.u32 %s41, 1
        %s559 = scalar_lea.sflag [#allocation6], %s558
        %s560 = sand.u32 %s126, 1
        %s561 = smul.addr %s560, 8
        %s562 = scalar_lea.vmem [#allocation7], %s561
        // Predicated region
        $region65: #{tpu_custom_call.1} parent=55 // pred_check
          %p563 = pneg %p139
        $region66: #{tpu_custom_call.1} parent=55 // pred_check_branch
          %565 = sbr.rel (%p563) target = $region68
        $region67: #{tpu_custom_call.1} parent=55 // pred_region
          %566 = dma.done %s559, 128
        $region68: #{tpu_custom_call.1} parent=55 // pred_fallthru
          _
        %s567 = sand.u32 %s41, 1
        %s568 = scalar_lea.sflag [#allocation9], %s567
        %s569 = sand.u32 %s152, 1
        %s570 = smul.addr %s569, 8
        %s571 = scalar_lea.vmem [#allocation8], %s570
        // Predicated region
        $region69: #{tpu_custom_call.1} parent=55 // pred_check
          %p572 = pneg %p165
        $region70: #{tpu_custom_call.1} parent=55 // pred_check_branch
          %574 = sbr.rel (%p572) target = $region72
        $region71: #{tpu_custom_call.1} parent=55 // pred_region
          %575 = dma.done %s568, 128
        $region72: #{tpu_custom_call.1} parent=55 // pred_fallthru
          _
        %s576 = sand.u32 %s41, 1
        %s577 = scalar_lea.sflag [#allocation9], %s576
        %s578 = sand.u32 %s178, 1
        %s579 = smul.addr %s578, 8
        %s580 = scalar_lea.vmem [#allocation10], %s579
        // Predicated region
        $region73: #{tpu_custom_call.1} parent=55 // pred_check
          %p581 = pneg %p191
        $region74: #{tpu_custom_call.1} parent=55 // pred_check_branch
          %583 = sbr.rel (%p581) target = $region76
        $region75: #{tpu_custom_call.1} parent=55 // pred_region
          %584 = dma.done %s577, 128
        $region76: #{tpu_custom_call.1} parent=55 // pred_fallthru
          _
        %s585 = sand.u32 %s204, 1
        %s586 = scalar_lea.sflag [#allocation12], %s585
        %s587 = sand.u32 %s204, 1
        %s588 = smul.addr %s587, 8
        %s589 = scalar_lea.vmem [#allocation11], %s588
        // Predicated region
        $region77: #{tpu_custom_call.1} parent=55 // pred_check
          %p590 = pneg %p217
        $region78: #{tpu_custom_call.1} parent=55 // pred_check_branch
          %592 = sbr.rel (%p590) target = $region80
        $region79: #{tpu_custom_call.1} parent=55 // pred_region
          %593 = dma.done %s586, 128
        $region80: #{tpu_custom_call.1} parent=55 // pred_fallthru
          _
        %s594 = sand.u32 %s70, 1
        %s595 = scalar_lea.sflag [#allocation3], %s594
        %s596 = sand.u32 %s70, 1
        %s597 = smul.addr %s596, 8
        %s598 = scalar_lea.vmem [#allocation2], %s597
        %p599 = pneg %p83
        %p600 = pneg %p80
        %s601 = sand.u32 %s41, 1
        %s602 = scalar_lea.sflag [#allocation6], %s601
        %s603 = sand.u32 %s98, 1
        %s604 = smul.addr %s603, 8
        %s605 = scalar_lea.vmem [#allocation5], %s604
        %p606 = pneg %p111
        %p607 = pneg %p108
        %s608 = sand.u32 %s41, 1
        %s609 = scalar_lea.sflag [#allocation6], %s608
        %s610 = sand.u32 %s126, 1
        %s611 = smul.addr %s610, 8
        %s612 = scalar_lea.vmem [#allocation7], %s611
        %p613 = pneg %p139
        %p614 = pneg %p136
        %s615 = sand.u32 %s41, 1
        %s616 = scalar_lea.sflag [#allocation9], %s615
        %s617 = sand.u32 %s152, 1
        %s618 = smul.addr %s617, 8
        %s619 = scalar_lea.vmem [#allocation8], %s618
        %p620 = pneg %p165
        %p621 = pneg %p162
        %s622 = sand.u32 %s41, 1
        %s623 = scalar_lea.sflag [#allocation9], %s622
        %s624 = sand.u32 %s178, 1
        %s625 = smul.addr %s624, 8
        %s626 = scalar_lea.vmem [#allocation10], %s625
        %p627 = pneg %p191
        %p628 = pneg %p188
        %s629 = sand.u32 %s204, 1
        %s630 = scalar_lea.sflag [#allocation12], %s629
        %s631 = sand.u32 %s204, 1
        %s632 = smul.addr %s631, 8
        %s633 = scalar_lea.vmem [#allocation11], %s632
        %p634 = pneg %p217
        %p635 = pneg %p214
        %p636 = scmp.lt.s32.totalorder %s48, 3
        %s637 = scalar_select %p636, %s48, 3
        %s638 = scalar_lea.vmem %s6, %s637
        %p639 = pneg %p243
        %p640 = pneg %p240
        %p641 = scmp.lt.s32.totalorder %s48, 3
        %s642 = scalar_select %p641, %s48, 3
        %s643 = scalar_lea.vmem %s7, %s642
        %p644 = pneg %p269
        %p645 = pneg %p266
        %p646 = scmp.lt.s32.totalorder %s48, 3
        %s647 = scalar_select %p646, %s48, 3
        %s648 = scalar_lea.vmem %s8, %s647
        %p649 = pneg %p295
        %p650 = pneg %p292
        %p651 = pneg %p325
        %p652 = pneg %p322
        %s653 = sand.u32 %s312, 1
        %s654 = scalar_lea.sflag [#allocation4], %s653
        %s655 = sand.u32 %s312, 1
        %s656 = smul.addr %s655, 8
        %s657 = scalar_lea.vmem [#allocation13], %s656
        %p658 = pneg %p355
        %p659 = pneg %p352
        %s660 = sand.u32 %s41, 1
        %s661 = scalar_lea.sflag [#allocation15], %s660
        %s662 = sand.u32 %s342, 1
        %s663 = smul.addr %s662, 8
        %s664 = scalar_lea.vmem [#allocation14], %s663
        %p665 = pneg %p385
        %p666 = pneg %p382
        %s667 = sand.u32 %s41, 1
        %s668 = scalar_lea.sflag [#allocation15], %s667
        %s669 = sand.u32 %s372, 1
        %s670 = smul.addr %s669, 8
        %s671 = scalar_lea.vmem [#allocation16], %s670
        %p672 = scmp.lt.s32.totalorder %s48, 3
        %s673 = scalar_select %p672, %s48, 3
        %s674 = scalar_lea.vmem %s6, %s673
        %p675 = scmp.lt.s32.totalorder %s48, 3
        %s676 = scalar_select %p675, %s48, 3
        %s677 = scalar_lea.vmem %s7, %s676
        %p678 = scmp.lt.s32.totalorder %s48, 3
        %s679 = scalar_select %p678, %s48, 3
        %s680 = scalar_lea.vmem %s8, %s679
        %v681 = vld [vmem:[%s544] sm:$0xff]
        %v682 = vld [vmem:[%s571] sm:$0xff]
        %v683 = vld [vmem:[%s674] sm:$0x1]
        %v685 = vlaneseq
        %v686 = vshrl.u32 %v685, 7
        %v687 = vsub.s32 0, %v686
        %v688 = vrot.slane %v683, %v687
        %vm690 = vcmask 261120
        %v692 = vsel %vm690, %v681, 0
        %v695 = vsel %vm690, %v682, 0
        %697 = vmatprep.subr.mxu0 0.0
        %698 = vmatpush1.xpose.msra.mxu0 0.0
        %699 = vmatprep.subr.mxu0 0.0
        %700 = vmatpush1.xpose.msra.mxu0 0.0
        %701 = vmatprep.subr.mxu0 0.0
        %702 = vmatpush1.xpose.msra.mxu0 0.0
        %703 = vmatprep.subr.mxu0 0.0
        %704 = vmatpush1.xpose.msra.mxu0 0.0
        %705 = vmatprep.subr.mxu0 0.0
        %706 = vmatpush1.xpose.msra.mxu0 0.0
        %707 = vmatprep.subr.mxu0 0.0
        %708 = vmatpush1.xpose.msra.mxu0 0.0
        %709 = vmatprep.subr.mxu0 0.0
        %710 = vmatpush1.xpose.msra.mxu0 0.0
        %711 = vmatprep.subr.mxu0 0.0
        %712 = vmatpush1.xpose.msra.mxu0 0.0
        %713 = vmatprep.subr.mxu0 0.0
        %714 = vmatpush1.xpose.msra.mxu0 0.0
        %715 = vmatprep.subr.mxu0 0.0
        %716 = vmatpush1.xpose.msra.mxu0 0.0
        %717 = vmatprep.subr.mxu0 0.0
        %718 = vmatpush1.xpose.msra.mxu0 0.0
        %719 = vmatprep.subr.mxu0 0.0
        %720 = vmatpush1.xpose.msra.mxu0 0.0
        %721 = vmatprep.subr.mxu0 0.0
        %722 = vmatpush1.xpose.msra.mxu0 0.0
        %723 = vmatprep.subr.mxu0 0.0
        %724 = vmatpush1.xpose.msra.mxu0 0.0
        %725 = vmatprep.subr.mxu0 0.0
        %726 = vmatpush1.xpose.msra.mxu0 0.0
        %727 = vmatprep.subr.mxu0 0.0
        %728 = vmatpush1.xpose.msra.mxu0 %v695
        %729 = vmatprep.subr.mxu0 0.0
        %730 = vmatpush2.xpose.msra.mxu0 0.0
        %731 = vmatprep.subr.mxu0 0.0
        %732 = vmatpush2.xpose.msra.mxu0 0.0
        %733 = vmatprep.subr.mxu0 0.0
        %734 = vmatpush2.xpose.msra.mxu0 0.0
        %735 = vmatprep.subr.mxu0 0.0
        %736 = vmatpush2.xpose.msra.mxu0 0.0
        %737 = vmatprep.subr.mxu0 0.0
        %738 = vmatpush2.xpose.msra.mxu0 0.0
        %739 = vmatprep.subr.mxu0 0.0
        %740 = vmatpush2.xpose.msra.mxu0 0.0
        %741 = vmatprep.subr.mxu0 0.0
        %742 = vmatpush2.xpose.msra.mxu0 0.0
        %743 = vmatprep.subr.mxu0 0.0
        %744 = vmatpush2.xpose.msra.mxu0 0.0
        %745 = vmatprep.subr.mxu0 0.0
        %746 = vmatpush2.xpose.msra.mxu0 0.0
        %747 = vmatprep.subr.mxu0 0.0
        %748 = vmatpush2.xpose.msra.mxu0 0.0
        %749 = vmatprep.subr.mxu0 0.0
        %750 = vmatpush2.xpose.msra.mxu0 0.0
        %751 = vmatprep.subr.mxu0 0.0
        %752 = vmatpush2.xpose.msra.mxu0 0.0
        %753 = vmatprep.subr.mxu0 0.0
        %754 = vmatpush2.xpose.msra.mxu0 0.0
        %755 = vmatprep.subr.mxu0 0.0
        %756 = vmatpush2.xpose.msra.mxu0 0.0
        %757 = vmatprep.subr.mxu0 0.0
        %758 = vmatpush2.xpose.msra.mxu0 0.0
        %759 = vmatprep.subr.mxu0 0.0
        %760 = vmatpush2.xpose.msra.mxu0 0.0
        %761 = vmatprep.mubr.f32.mxu0 0.0
        %762 = vmatmul.mubr.f32.gmra.mxu0 %v692
        %v763 = vpop.f32.mrf.mxu0
        %v764 = vadd.f32 %v688, %v763
        %v765 = vpop.f32.mrf.mxu0
        %766 = vdwg.mxu0
        %vm767 = vcmask 64512
        %768 = vst.msk [vmem:[%s657] sm:$0xff] %vm767, %v764
        %v769 = vld [vmem:[%s553] sm:$0xff]
        %v770 = vld [vmem:[%s580] sm:$0xff]
        %v771 = vld [vmem:[%s677] sm:$0x1]
        %v773 = vlaneseq
        %v774 = vshrl.u32 %v773, 7
        %v775 = vsub.s32 0, %v774
        %v776 = vrot.slane %v771, %v775
        %v779 = vsel %vm690, %v769, 0
        %v782 = vsel %vm690, %v770, 0
        %784 = vmatprep.subr.mxu0 0.0
        %785 = vmatpush1.xpose.msra.mxu0 0.0
        %786 = vmatprep.subr.mxu0 0.0
        %787 = vmatpush1.xpose.msra.mxu0 0.0
        %788 = vmatprep.subr.mxu0 0.0
        %789 = vmatpush1.xpose.msra.mxu0 0.0
        %790 = vmatprep.subr.mxu0 0.0
        %791 = vmatpush1.xpose.msra.mxu0 0.0
        %792 = vmatprep.subr.mxu0 0.0
        %793 = vmatpush1.xpose.msra.mxu0 0.0
        %794 = vmatprep.subr.mxu0 0.0
        %795 = vmatpush1.xpose.msra.mxu0 0.0
        %796 = vmatprep.subr.mxu0 0.0
        %797 = vmatpush1.xpose.msra.mxu0 0.0
        %798 = vmatprep.subr.mxu0 0.0
        %799 = vmatpush1.xpose.msra.mxu0 0.0
        %800 = vmatprep.subr.mxu0 0.0
        %801 = vmatpush1.xpose.msra.mxu0 0.0
        %802 = vmatprep.subr.mxu0 0.0
        %803 = vmatpush1.xpose.msra.mxu0 0.0
        %804 = vmatprep.subr.mxu0 0.0
        %805 = vmatpush1.xpose.msra.mxu0 0.0
        %806 = vmatprep.subr.mxu0 0.0
        %807 = vmatpush1.xpose.msra.mxu0 0.0
        %808 = vmatprep.subr.mxu0 0.0
        %809 = vmatpush1.xpose.msra.mxu0 0.0
        %810 = vmatprep.subr.mxu0 0.0
        %811 = vmatpush1.xpose.msra.mxu0 0.0
        %812 = vmatprep.subr.mxu0 0.0
        %813 = vmatpush1.xpose.msra.mxu0 0.0
        %814 = vmatprep.subr.mxu0 0.0
        %815 = vmatpush1.xpose.msra.mxu0 %v782
        %816 = vmatprep.subr.mxu0 0.0
        %817 = vmatpush2.xpose.msra.mxu0 0.0
        %818 = vmatprep.subr.mxu0 0.0
        %819 = vmatpush2.xpose.msra.mxu0 0.0
        %820 = vmatprep.subr.mxu0 0.0
        %821 = vmatpush2.xpose.msra.mxu0 0.0
        %822 = vmatprep.subr.mxu0 0.0
        %823 = vmatpush2.xpose.msra.mxu0 0.0
        %824 = vmatprep.subr.mxu0 0.0
        %825 = vmatpush2.xpose.msra.mxu0 0.0
        %826 = vmatprep.subr.mxu0 0.0
        %827 = vmatpush2.xpose.msra.mxu0 0.0
        %828 = vmatprep.subr.mxu0 0.0
        %829 = vmatpush2.xpose.msra.mxu0 0.0
        %830 = vmatprep.subr.mxu0 0.0
        %831 = vmatpush2.xpose.msra.mxu0 0.0
        %832 = vmatprep.subr.mxu0 0.0
        %833 = vmatpush2.xpose.msra.mxu0 0.0
        %834 = vmatprep.subr.mxu0 0.0
        %835 = vmatpush2.xpose.msra.mxu0 0.0
        %836 = vmatprep.subr.mxu0 0.0
        %837 = vmatpush2.xpose.msra.mxu0 0.0
        %838 = vmatprep.subr.mxu0 0.0
        %839 = vmatpush2.xpose.msra.mxu0 0.0
        %840 = vmatprep.subr.mxu0 0.0
        %841 = vmatpush2.xpose.msra.mxu0 0.0
        %842 = vmatprep.subr.mxu0 0.0
        %843 = vmatpush2.xpose.msra.mxu0 0.0
        %844 = vmatprep.subr.mxu0 0.0
        %845 = vmatpush2.xpose.msra.mxu0 0.0
        %846 = vmatprep.subr.mxu0 0.0
        %847 = vmatpush2.xpose.msra.mxu0 0.0
        %848 = vmatprep.mubr.f32.mxu0 0.0
        %849 = vmatmul.mubr.f32.gmra.mxu0 %v779
        %v850 = vpop.f32.mrf.mxu0
        %v851 = vadd.f32 %v776, %v850
        %v852 = vpop.f32.mrf.mxu0
        %853 = vdwg.mxu0
        %854 = vst.msk [vmem:[%s664] sm:$0xff] %vm767, %v851
        %v855 = vld [vmem:[%s562] sm:$0xff]
        %v856 = vld [vmem:[%s589] sm:$0xff]
        %v857 = vld [vmem:[%s680] sm:$0x1]
        %v859 = vlaneseq
        %v860 = vshrl.u32 %v859, 7
        %v861 = vsub.s32 0, %v860
        %v862 = vrot.slane %v857, %v861
        %v865 = vsel %vm690, %v855, 0
        %v868 = vsel %vm690, %v856, 0
        %870 = vmatprep.subr.mxu0 0.0
        %871 = vmatpush1.xpose.msra.mxu0 0.0
        %872 = vmatprep.subr.mxu0 0.0
        %873 = vmatpush1.xpose.msra.mxu0 0.0
        %874 = vmatprep.subr.mxu0 0.0
        %875 = vmatpush1.xpose.msra.mxu0 0.0
        %876 = vmatprep.subr.mxu0 0.0
        %877 = vmatpush1.xpose.msra.mxu0 0.0
        %878 = vmatprep.subr.mxu0 0.0
        %879 = vmatpush1.xpose.msra.mxu0 0.0
        %880 = vmatprep.subr.mxu0 0.0
        %881 = vmatpush1.xpose.msra.mxu0 0.0
        %882 = vmatprep.subr.mxu0 0.0
        %883 = vmatpush1.xpose.msra.mxu0 0.0
        %884 = vmatprep.subr.mxu0 0.0
        %885 = vmatpush1.xpose.msra.mxu0 0.0
        %886 = vmatprep.subr.mxu0 0.0
        %887 = vmatpush1.xpose.msra.mxu0 0.0
        %888 = vmatprep.subr.mxu0 0.0
        %889 = vmatpush1.xpose.msra.mxu0 0.0
        %890 = vmatprep.subr.mxu0 0.0
        %891 = vmatpush1.xpose.msra.mxu0 0.0
        %892 = vmatprep.subr.mxu0 0.0
        %893 = vmatpush1.xpose.msra.mxu0 0.0
        %894 = vmatprep.subr.mxu0 0.0
        %895 = vmatpush1.xpose.msra.mxu0 0.0
        %896 = vmatprep.subr.mxu0 0.0
        %897 = vmatpush1.xpose.msra.mxu0 0.0
        %898 = vmatprep.subr.mxu0 0.0
        %899 = vmatpush1.xpose.msra.mxu0 0.0
        %900 = vmatprep.subr.mxu0 0.0
        %901 = vmatpush1.xpose.msra.mxu0 %v868
        %902 = vmatprep.subr.mxu0 0.0
        %903 = vmatpush2.xpose.msra.mxu0 0.0
        %904 = vmatprep.subr.mxu0 0.0
        %905 = vmatpush2.xpose.msra.mxu0 0.0
        %906 = vmatprep.subr.mxu0 0.0
        %907 = vmatpush2.xpose.msra.mxu0 0.0
        %908 = vmatprep.subr.mxu0 0.0
        %909 = vmatpush2.xpose.msra.mxu0 0.0
        %910 = vmatprep.subr.mxu0 0.0
        %911 = vmatpush2.xpose.msra.mxu0 0.0
        %912 = vmatprep.subr.mxu0 0.0
        %913 = vmatpush2.xpose.msra.mxu0 0.0
        %914 = vmatprep.subr.mxu0 0.0
        %915 = vmatpush2.xpose.msra.mxu0 0.0
        %916 = vmatprep.subr.mxu0 0.0
        %917 = vmatpush2.xpose.msra.mxu0 0.0
        %918 = vmatprep.subr.mxu0 0.0
        %919 = vmatpush2.xpose.msra.mxu0 0.0
        %920 = vmatprep.subr.mxu0 0.0
        %921 = vmatpush2.xpose.msra.mxu0 0.0
        %922 = vmatprep.subr.mxu0 0.0
        %923 = vmatpush2.xpose.msra.mxu0 0.0
        %924 = vmatprep.subr.mxu0 0.0
        %925 = vmatpush2.xpose.msra.mxu0 0.0
        %926 = vmatprep.subr.mxu0 0.0
        %927 = vmatpush2.xpose.msra.mxu0 0.0
        %928 = vmatprep.subr.mxu0 0.0
        %929 = vmatpush2.xpose.msra.mxu0 0.0
        %930 = vmatprep.subr.mxu0 0.0
        %931 = vmatpush2.xpose.msra.mxu0 0.0
        %932 = vmatprep.subr.mxu0 0.0
        %933 = vmatpush2.xpose.msra.mxu0 0.0
        %934 = vmatprep.mubr.f32.mxu0 0.0
        %935 = vmatmul.mubr.f32.gmra.mxu0 %v865
        %v936 = vpop.f32.mrf.mxu0
        %v937 = vadd.f32 %v862, %v936
        %v938 = vpop.f32.mrf.mxu0
        %939 = vdwg.mxu0
        %940 = vst.msk [vmem:[%s671] sm:$0xff] %vm767, %v937
        %s941 = sand.u32 %s312, 1
        %s942 = scalar_lea.sflag [#allocation4], %s941
        %s943 = sand.u32 %s312, 1
        %s944 = smul.addr %s943, 8
        %s945 = scalar_lea.vmem [#allocation13], %s944
        %s946 = sand.u32 %s41, 1
        %s947 = scalar_lea.sflag [#allocation15], %s946
        %s948 = sand.u32 %s342, 1
        %s949 = smul.addr %s948, 8
        %s950 = scalar_lea.vmem [#allocation14], %s949
        %s951 = sand.u32 %s41, 1
        %s952 = scalar_lea.sflag [#allocation15], %s951
        %s953 = sand.u32 %s372, 1
        %s954 = smul.addr %s953, 8
        %s955 = scalar_lea.vmem [#allocation16], %s954
        // Predicated region
        $region81: #{tpu_custom_call.1} parent=55 // pred_check
          %p956 = pneg %p322
        $region82: #{tpu_custom_call.1} parent=55 // pred_check_branch
          %958 = sbr.rel (%p956) target = $region84
        $region83: #{tpu_custom_call.1} parent=55 // pred_region
          %s960 = ssub.s32 128, 128
          %961 = vsyncadd %s942, %s960
          %s962 = sadd.s32 %s47, %s48
          %s963 = smul.addr %s46, 4
          %s964 = sadd.s32 %s962, %s963
          %s965 = smul.addr %s964, 128
          %s966 = scalar_lea.hbm %s9, %s965
          %s968 = sshll.u32 %s945, 4
          %s969 = int_to_ptr.vmem [resolvable:$true] %s968
          %971 = dma.vmem_to_hbm [thread:$0]  %s969, 128, %s966, %s942
        $region84: #{tpu_custom_call.1} parent=55 // pred_fallthru
          _
        // Predicated region
        $region85: #{tpu_custom_call.1} parent=55 // pred_check
          %p972 = pneg %p352
        $region86: #{tpu_custom_call.1} parent=55 // pred_check_branch
          %974 = sbr.rel (%p972) target = $region88
        $region87: #{tpu_custom_call.1} parent=55 // pred_region
          %s976 = ssub.s32 128, 128
          %977 = vsyncadd %s947, %s976
          %s978 = sadd.s32 %s47, %s48
          %s979 = smul.addr %s46, 4
          %s980 = sadd.s32 %s978, %s979
          %s981 = smul.addr %s980, 128
          %s982 = scalar_lea.hbm %s10, %s981
          %s984 = sshll.u32 %s950, 4
          %s985 = int_to_ptr.vmem [resolvable:$true] %s984
          %987 = dma.vmem_to_hbm [thread:$0]  %s985, 128, %s982, %s947
        $region88: #{tpu_custom_call.1} parent=55 // pred_fallthru
          _
        // Predicated region
        $region89: #{tpu_custom_call.1} parent=55 // pred_check
          %p988 = pneg %p382
        $region90: #{tpu_custom_call.1} parent=55 // pred_check_branch
          %990 = sbr.rel (%p988) target = $region92
        $region91: #{tpu_custom_call.1} parent=55 // pred_region
          %s992 = ssub.s32 128, 128
          %993 = vsyncadd %s952, %s992
          %s994 = sadd.s32 %s47, %s48
          %s995 = smul.addr %s46, 4
          %s996 = sadd.s32 %s994, %s995
          %s997 = smul.addr %s996, 128
          %s998 = scalar_lea.hbm %s11, %s997
          %s1000 = sshll.u32 %s955, 4
          %s1001 = int_to_ptr.vmem [resolvable:$true] %s1000
          %1003 = dma.vmem_to_hbm [thread:$0]  %s1001, 128, %s998, %s952
        $region92: #{tpu_custom_call.1} parent=55 // pred_fallthru
          _
      $region56: #{tpu_custom_call.1} parent=5 // pred_fallthru
        _
      %p1004 = scmp.le.s32.totalorder 2, %s36
      // Predicated region
      $region93: #{tpu_custom_call.1} parent=5 // pred_check
        %p1005 = pneg %p1004
      $region94: #{tpu_custom_call.1} parent=5 // pred_check_branch
        %1007 = sbr.rel (%p1005) target = $region96
      $region95: #{tpu_custom_call.1} parent=5 // pred_region
        %s1008 = ssub.s32 %s36, 2
        // Predicated region
        $region97: #{tpu_custom_call.1} parent=95 // pred_check
          %p1009 = pneg %p328
        $region98: #{tpu_custom_call.1} parent=95 // pred_check_branch
          %1011 = sbr.rel (%p1009) target = $region100
        $region99: #{tpu_custom_call.1} parent=95 // pred_region
          %s1012 = sand.u32 %s313, 1
          %s1013 = scalar_lea.sflag [#allocation4], %s1012
          %s1014 = sand.u32 %s313, 1
          %s1015 = smul.addr %s1014, 8
          %s1016 = scalar_lea.vmem [#allocation13], %s1015
          %1017 = dma.done %s1013, 128
        $region100: #{tpu_custom_call.1} parent=95 // pred_fallthru
          _
        // Predicated region
        $region101: #{tpu_custom_call.1} parent=95 // pred_check
          %p1018 = pneg %p358
        $region102: #{tpu_custom_call.1} parent=95 // pred_check_branch
          %1020 = sbr.rel (%p1018) target = $region104
        $region103: #{tpu_custom_call.1} parent=95 // pred_region
          %s1021 = sand.u32 %s42, 1
          %s1022 = scalar_lea.sflag [#allocation15], %s1021
          %s1023 = sand.u32 %s343, 1
          %s1024 = smul.addr %s1023, 8
          %s1025 = scalar_lea.vmem [#allocation14], %s1024
          %1026 = dma.done %s1022, 128
        $region104: #{tpu_custom_call.1} parent=95 // pred_fallthru
          _
        // Predicated region
        $region105: #{tpu_custom_call.1} parent=95 // pred_check
          %p1027 = pneg %p388
        $region106: #{tpu_custom_call.1} parent=95 // pred_check_branch
          %1029 = sbr.rel (%p1027) target = $region108
        $region107: #{tpu_custom_call.1} parent=95 // pred_region
          %s1030 = sand.u32 %s42, 1
          %s1031 = scalar_lea.sflag [#allocation15], %s1030
          %s1032 = sand.u32 %s373, 1
          %s1033 = smul.addr %s1032, 8
          %s1034 = scalar_lea.vmem [#allocation16], %s1033
          %1035 = dma.done %s1031, 128
        $region108: #{tpu_custom_call.1} parent=95 // pred_fallthru
          _
      $region96: #{tpu_custom_call.1} parent=5 // pred_fallthru
        _
    $region6: #{tpu_custom_call.1} parent=1 // loop_footer
      %s40 = sadd.s32 1, %s36
    $region7: #{tpu_custom_call.1} parent=1 // loop_footer_branch
      %35 = sbr.rel target = $region3
    $region8: #{tpu_custom_call.1} parent=1 // loop_exit
      _
    %1036 = vsyncpa [#allocation3], 1
    %s1037 = scalar_lea.sflag [#allocation3], 1
    %1038 = vsyncpa %s1037, 1
    %1039 = vsyncpa [#allocation6], 1
    %s1040 = scalar_lea.sflag [#allocation6], 1
    %1041 = vsyncpa %s1040, 1
    %1042 = vsyncpa [#allocation9], 1
    %s1043 = scalar_lea.sflag [#allocation9], 1
    %1044 = vsyncpa %s1043, 1
    %1045 = vsyncpa [#allocation12], 1
    %s1046 = scalar_lea.sflag [#allocation12], 1
    %1047 = vsyncpa %s1046, 1
    %1048 = vsyncpa [#allocation4], 1
    %s1049 = scalar_lea.sflag [#allocation4], 1
    %1050 = vsyncpa %s1049, 1
    %1051 = vsyncpa [#allocation15], 1
    %s1052 = scalar_lea.sflag [#allocation15], 1
    %1053 = vsyncpa %s1052, 1

</llo_original>
